<compile_context>
chip_gen: v6e
topology: v6e:2x2x1
jax: 0.10.0
libtpu: 0.0.40
codegen_flags: <defaults>
</compile_context>

<pallas_src>
import functools

import jax
import jax.numpy as jnp
from jax.experimental import pallas as pl
from jax.experimental.pallas import tpu as pltpu


def _shift_down(x, s):
    """out[:, n] = x[:, n - s] for n >= s, else 0   (s is a static positive int)."""
    pad = jnp.zeros((x.shape[0], s), x.dtype)
    return jnp.concatenate([pad, x[:, : x.shape[1] - s]], axis=1)


def _shift_up(x, s):
    """out[:, n] = x[:, n + s] for n < N - s, else 0   (s is a static positive int)."""
    pad = jnp.zeros((x.shape[0], s), x.dtype)
    return jnp.concatenate([x[:, s:], pad], axis=1)


def _dwconv_kernel(x_ref, w_ref, b_ref, o_ref, *, H, W):
    # x_ref: (1, CT, N)   w_ref: (CT, 9)   b_ref: (CT, 1)   o_ref: (1, CT, N)
    x = x_ref[0].astype(jnp.float32)      # (CT, N), N = H*W on the lane axis
    w = w_ref[...].astype(jnp.float32)    # (CT, 9), tap (kh, kw) at column 3*kh+kw
    CT, N = x.shape

    # Column (w) index of each flattened token; +/-1 shifts along the flattened
    # N axis must not leak across row boundaries, so mask w==0 / w==W-1 lanes.
    col = jax.lax.broadcasted_iota(jnp.int32, (CT, N), 1) % W

    if W > 1:
        x_l = jnp.where(col != 0, _shift_down(x, 1), 0.0)      # x[.., w-1]
        x_r = jnp.where(col != W - 1, _shift_up(x, 1), 0.0)    # x[.., w+1]
    else:
        x_l = jnp.zeros_like(x)
        x_r = jnp.zeros_like(x)
    taps = (x_l, x, x_r)                                       # kw = 0, 1, 2

    def row(kh):
        # Per-channel tap weights, (CT, 1) broadcast along the lane (N) axis.
        r = taps[0] * w[:, 3 * kh + 0:3 * kh + 1]
        r = r + taps[1] * w[:, 3 * kh + 1:3 * kh + 2]
        r = r + taps[2] * w[:, 3 * kh + 2:3 * kh + 3]
        return r

    # Accumulator starts as the broadcast bias (saves one full-tile add).
    acc = b_ref[...].astype(jnp.float32) + row(1)              # kh = 1 (dh =  0)
    if H > 1:
        # Row shifts by a multiple of W preserve the column masks; the
        # zero-filled shift also handles the top/bottom padding rows.
        acc = acc + _shift_down(row(0), W)                     # kh = 0 (dh = -1)
        acc = acc + _shift_up(row(2), W)                       # kh = 2 (dh = +1)

    o_ref[0] = acc.astype(o_ref.dtype)


def _pick_ct(C):
    # Largest channel tile <= 128 that divides C and is a multiple of 8
    # (sublane alignment).  Otherwise fall back to the full channel extent,
    # which always satisfies the BlockSpec tiling rule.
    for ct in (128, 64, 32, 16, 8):
        if C % ct == 0:
            return ct
    return C


def dwconv_pallas(x, H, W, weight, bias):
    """x: (B, C, N) with N == H*W; weight: (C, 1, 3, 3); bias: (C,).
    Returns (B, C, N), matching DWConv.forward (Conv2d(C, C, 3, 1, 1, groups=C))."""
    B, C, N = x.shape
    assert N == H * W

    w2 = weight.reshape(C, 9)     # depthwise taps, per-channel rows
    b2 = bias.reshape(C, 1)

    CT = _pick_ct(C)
    grid = (B, C // CT)

    return pl.pallas_call(
        functools.partial(_dwconv_kernel, H=H, W=W),
        out_shape=jax.ShapeDtypeStruct((B, C, N), x.dtype),
        grid=grid,
        in_specs=[
            pl.BlockSpec((1, CT, N), lambda b, c: (b, c, 0)),
            pl.BlockSpec((CT, 9), lambda b, c: (c, 0)),
            pl.BlockSpec((CT, 1), lambda b, c: (c, 0)),
        ],
        out_specs=pl.BlockSpec((1, CT, N), lambda b, c: (b, c, 0)),
        compiler_params=pltpu.CompilerParams(
            dimension_semantics=("parallel", "parallel")),
    )(x, w2, b2)


if __name__ == "__main__":
    B, C, H, W = 2, 4, 16, 16
    N = H * W

    key = jax.random.PRNGKey(0)
    kx, kw, kb = jax.random.split(key, 3)

    x = jax.random.normal(kx, (B, C, N), dtype=jnp.float32)
    # Deterministic synthetic params (shapes match nn.Conv2d(C, C, 3, 1, 1, groups=C)).
    weight = 0.1 * jax.random.normal(kw, (C, 1, 3, 3), dtype=jnp.float32)
    bias = 0.1 * jax.random.normal(kb, (C,), dtype=jnp.float32)

    out = dwconv_pallas(x, H, W, weight, bias)
    out = jax.block_until_ready(out)

    # Reference: XLA grouped conv + bias (the PyTorch module uses bias=True;
    # the previous check omitted the bias, which caused the mismatch).
    ref = jax.lax.conv_general_dilated(
        x.reshape(B, C, H, W), weight,
        window_strides=(1, 1), padding=((1, 1), (1, 1)),
        feature_group_count=C,
        dimension_numbers=("NCHW", "OIHW", "NCHW"),
    ) + bias.reshape(1, C, 1, 1)
    ref = ref.reshape(B, C, N)

    assert out.shape == (B, C, N)
    assert jnp.allclose(out, ref, atol=1e-5, rtol=1e-5)
    print("KERNEL_OK")
</pallas_src>

<mosaic_0001>
module attributes {stable_mosaic.version = 11 : i64} {
  func.func @_dwconv_kernel(%arg0: i32, %arg1: i32, %arg2: memref<1x4x256xf32, #tpu.memory_space<vmem>>, %arg3: memref<4x9xf32, #tpu.memory_space<vmem>>, %arg4: memref<4x1xf32, #tpu.memory_space<vmem>>, %arg5: memref<1x4x256xf32, #tpu.memory_space<vmem>>) attributes {dimension_semantics = [#tpu.dimension_semantics<parallel>, #tpu.dimension_semantics<parallel>], iteration_bounds = array<i64: 2, 1>, scalar_prefetch = 0 : i64, scratch_operands = 0 : i64, tpu.core_type = #tpu.core_type<tc>, window_params = [{transform_indices = @transform_0, window_bounds = array<i64: 1, 4, 256>}, {transform_indices = @transform_1, window_bounds = array<i64: 4, 9>}, {transform_indices = @transform_2, window_bounds = array<i64: 4, 1>}, {transform_indices = @transform_3, window_bounds = array<i64: 1, 4, 256>}]} {
    %c0 = arith.constant 0 : index
    %c0_0 = arith.constant 0 : index
    %c0_1 = arith.constant 0 : index
    %0 = vector.load %arg2[%c0, %c0_0, %c0_1] : memref<1x4x256xf32, #tpu.memory_space<vmem>>, vector<1x4x256xf32>
    %1 = vector.shape_cast %0 : vector<1x4x256xf32> to vector<4x256xf32>
    %c0_2 = arith.constant 0 : index
    %c0_3 = arith.constant 0 : index
    %2 = vector.load %arg3[%c0_2, %c0_3] : memref<4x9xf32, #tpu.memory_space<vmem>>, vector<4x9xf32>
    %3 = tpu.iota {dimensions = array<i32: 1>} : vector<4x256xi32>
    %c16_i32 = arith.constant 16 : i32
    %c0_i32 = arith.constant 0 : i32
    %4 = arith.cmpi eq, %c16_i32, %c0_i32 : i32
    %c1_i32 = arith.constant 1 : i32
    %5 = arith.select %4, %c1_i32, %c16_i32 : i32
    %6 = vector.broadcast %5 : i32 to vector<4x256xi32>
    %7 = arith.remsi %3, %6 : vector<4x256xi32>
    %c0_i32_4 = arith.constant 0 : i32
    %8 = vector.broadcast %c0_i32_4 : i32 to vector<4x256xi32>
    %9 = arith.cmpi ne, %7, %8 : vector<4x256xi32>
    %c0_i32_5 = arith.constant 0 : i32
    %10 = vector.broadcast %c0_i32_5 : i32 to vector<4x256xi32>
    %11 = arith.cmpi slt, %7, %10 : vector<4x256xi32>
    %c0_i32_6 = arith.constant 0 : i32
    %12 = arith.cmpi slt, %5, %c0_i32_6 : i32
    %13 = vector.broadcast %12 : i1 to vector<4x256xi1>
    %14 = vector.broadcast %13 : vector<4x256xi1> to vector<4x256xi1>
    %15 = arith.xori %11, %14 : vector<4x256xi1>
    %16 = arith.andi %15, %9 : vector<4x256xi1>
    %17 = vector.broadcast %5 : i32 to vector<4x256xi32>
    %18 = arith.addi %7, %17 : vector<4x256xi32>
    %19 = arith.select %16, %18, %7 : vector<4x256xi1>, vector<4x256xi32>
    %c0_i32_7 = arith.constant 0 : i32
    %20 = vector.broadcast %c0_i32_7 : i32 to vector<4x256xi32>
    %21 = arith.cmpi ne, %19, %20 : vector<4x256xi32>
    %cst = arith.constant 0.000000e+00 : f32
    %22 = vector.broadcast %cst : f32 to vector<4x1xf32>
    %23 = vector.extract_strided_slice %1 {offsets = [0, 0], sizes = [4, 255], strides = [1, 1]} : vector<4x256xf32> to vector<4x255xf32>
    %24 = tpu.concatenate %22, %23 in 1 : vector<4x1xf32>, vector<4x255xf32> -> vector<4x256xf32>
    %cst_8 = arith.constant 0.000000e+00 : f32
    %25 = vector.broadcast %cst_8 : f32 to vector<4x256xf32>
    %26 = arith.select %21, %24, %25 : vector<4x256xi1>, vector<4x256xf32>
    %c15_i32 = arith.constant 15 : i32
    %27 = vector.broadcast %c15_i32 : i32 to vector<4x256xi32>
    %28 = arith.cmpi ne, %19, %27 : vector<4x256xi32>
    %cst_9 = arith.constant 0.000000e+00 : f32
    %29 = vector.broadcast %cst_9 : f32 to vector<4x1xf32>
    %30 = vector.extract_strided_slice %1 {offsets = [0, 1], sizes = [4, 255], strides = [1, 1]} : vector<4x256xf32> to vector<4x255xf32>
    %31 = tpu.concatenate %30, %29 in 1 : vector<4x255xf32>, vector<4x1xf32> -> vector<4x256xf32>
    %cst_10 = arith.constant 0.000000e+00 : f32
    %32 = vector.broadcast %cst_10 : f32 to vector<4x256xf32>
    %33 = arith.select %28, %31, %32 : vector<4x256xi1>, vector<4x256xf32>
    %c0_11 = arith.constant 0 : index
    %c0_12 = arith.constant 0 : index
    %34 = vector.load %arg4[%c0_11, %c0_12] : memref<4x1xf32, #tpu.memory_space<vmem>>, vector<4x1xf32>
    %35 = vector.extract_strided_slice %2 {offsets = [0, 3], sizes = [4, 1], strides = [1, 1]} : vector<4x9xf32> to vector<4x1xf32>
    %36 = vector.broadcast %35 : vector<4x1xf32> to vector<4x256xf32>
    %37 = arith.mulf %26, %36 : vector<4x256xf32>
    %38 = vector.extract_strided_slice %2 {offsets = [0, 4], sizes = [4, 1], strides = [1, 1]} : vector<4x9xf32> to vector<4x1xf32>
    %39 = vector.broadcast %38 : vector<4x1xf32> to vector<4x256xf32>
    %40 = arith.mulf %1, %39 : vector<4x256xf32>
    %41 = arith.addf %37, %40 : vector<4x256xf32>
    %42 = vector.extract_strided_slice %2 {offsets = [0, 5], sizes = [4, 1], strides = [1, 1]} : vector<4x9xf32> to vector<4x1xf32>
    %43 = vector.broadcast %42 : vector<4x1xf32> to vector<4x256xf32>
    %44 = arith.mulf %33, %43 : vector<4x256xf32>
    %45 = arith.addf %41, %44 : vector<4x256xf32>
    %46 = vector.broadcast %34 : vector<4x1xf32> to vector<4x256xf32>
    %47 = arith.addf %46, %45 : vector<4x256xf32>
    %48 = vector.extract_strided_slice %2 {offsets = [0, 0], sizes = [4, 1], strides = [1, 1]} : vector<4x9xf32> to vector<4x1xf32>
    %49 = vector.broadcast %48 : vector<4x1xf32> to vector<4x256xf32>
    %50 = arith.mulf %26, %49 : vector<4x256xf32>
    %51 = vector.extract_strided_slice %2 {offsets = [0, 1], sizes = [4, 1], strides = [1, 1]} : vector<4x9xf32> to vector<4x1xf32>
    %52 = vector.broadcast %51 : vector<4x1xf32> to vector<4x256xf32>
    %53 = arith.mulf %1, %52 : vector<4x256xf32>
    %54 = arith.addf %50, %53 : vector<4x256xf32>
    %55 = vector.extract_strided_slice %2 {offsets = [0, 2], sizes = [4, 1], strides = [1, 1]} : vector<4x9xf32> to vector<4x1xf32>
    %56 = vector.broadcast %55 : vector<4x1xf32> to vector<4x256xf32>
    %57 = arith.mulf %33, %56 : vector<4x256xf32>
    %58 = arith.addf %54, %57 : vector<4x256xf32>
    %cst_13 = arith.constant 0.000000e+00 : f32
    %59 = vector.broadcast %cst_13 : f32 to vector<4x16xf32>
    %60 = vector.extract_strided_slice %58 {offsets = [0, 0], sizes = [4, 240], strides = [1, 1]} : vector<4x256xf32> to vector<4x240xf32>
    %61 = tpu.concatenate %59, %60 in 1 : vector<4x16xf32>, vector<4x240xf32> -> vector<4x256xf32>
    %62 = arith.addf %47, %61 : vector<4x256xf32>
    %63 = vector.extract_strided_slice %2 {offsets = [0, 6], sizes = [4, 1], strides = [1, 1]} : vector<4x9xf32> to vector<4x1xf32>
    %64 = vector.broadcast %63 : vector<4x1xf32> to vector<4x256xf32>
    %65 = arith.mulf %26, %64 : vector<4x256xf32>
    %66 = vector.extract_strided_slice %2 {offsets = [0, 7], sizes = [4, 1], strides = [1, 1]} : vector<4x9xf32> to vector<4x1xf32>
    %67 = vector.broadcast %66 : vector<4x1xf32> to vector<4x256xf32>
    %68 = arith.mulf %1, %67 : vector<4x256xf32>
    %69 = arith.addf %65, %68 : vector<4x256xf32>
    %70 = vector.extract_strided_slice %2 {offsets = [0, 8], sizes = [4, 1], strides = [1, 1]} : vector<4x9xf32> to vector<4x1xf32>
    %71 = vector.broadcast %70 : vector<4x1xf32> to vector<4x256xf32>
    %72 = arith.mulf %33, %71 : vector<4x256xf32>
    %73 = arith.addf %69, %72 : vector<4x256xf32>
    %cst_14 = arith.constant 0.000000e+00 : f32
    %74 = vector.broadcast %cst_14 : f32 to vector<4x16xf32>
    %75 = vector.extract_strided_slice %73 {offsets = [0, 16], sizes = [4, 240], strides = [1, 1]} : vector<4x256xf32> to vector<4x240xf32>
    %76 = tpu.concatenate %75, %74 in 1 : vector<4x240xf32>, vector<4x16xf32> -> vector<4x256xf32>
    %77 = arith.addf %62, %76 : vector<4x256xf32>
    %c0_15 = arith.constant 0 : index
    %c0_16 = arith.constant 0 : index
    %c0_17 = arith.constant 0 : index
    %78 = vector.load %arg5[%c0_15, %c0_16, %c0_17] : memref<1x4x256xf32, #tpu.memory_space<vmem>>, vector<1x4x256xf32>
    %79 = vector.shape_cast %78 : vector<1x4x256xf32> to vector<4x256xf32>
    %80 = vector.shape_cast %77 : vector<4x256xf32> to vector<1x4x256xf32>
    tpu.vector_store %arg5[%c0_15, %c0_16, %c0_17], %80 {strides = array<i32>} : memref<1x4x256xf32, #tpu.memory_space<vmem>>, vector<1x4x256xf32>,
    return
  }
  func.func @transform_0(%arg0: i32, %arg1: i32) -> (i32, i32, i32) {
    %c0_i32 = arith.constant 0 : i32
    %c0_i32_0 = arith.constant 0 : i32
    return %arg0, %arg1, %c0_i32 : i32, i32, i32
  }
  func.func @transform_1(%arg0: i32, %arg1: i32) -> (i32, i32) {
    %c0_i32 = arith.constant 0 : i32
    %c0_i32_0 = arith.constant 0 : i32
    return %arg1, %c0_i32 : i32, i32
  }
  func.func @transform_2(%arg0: i32, %arg1: i32) -> (i32, i32) {
    %c0_i32 = arith.constant 0 : i32
    %c0_i32_0 = arith.constant 0 : i32
    return %arg1, %c0_i32 : i32, i32
  }
  func.func @transform_3(%arg0: i32, %arg1: i32) -> (i32, i32, i32) {
    %c0_i32 = arith.constant 0 : i32
    %c0_i32_0 = arith.constant 0 : i32
    return %arg0, %arg1, %c0_i32 : i32, i32, i32
  }
}

</mosaic_0001>

<llo_original>
// kernel: tpu_custom_call.1
$region0: #{tpu_custom_call.1}
  #allocation0 [shape = 'u32[]', space=smem, size = 0x4, offset = 0x4, fixed_abs, tag = 'smem constant byte address 0x4 - core index']
  #allocation1 [shape = 'u32[144,128]{1,0:T(1,128)}', space=vmem, size = 0x12000, scoped, tag = 'internal scratch']
  %s0 = inlined_call_operand.hbm [shape: f32[2,4,256], index: 0, kind: input, shape index: {}]
  %s1 = inlined_call_operand.vmem [shape: f32[4,9], index: 1, kind: input, shape index: {}]
  %s2 = inlined_call_operand.vmem [shape: f32[4,1], index: 2, kind: input, shape index: {}]
  %s3 = inlined_call_operand.hbm [shape: f32[2,4,256], index: 3, kind: output, shape index: {}]
  %s4 = sld [smem:[#allocation0]]
  $region49: #{tpu_custom_call.1} parent=0
    _
  %s6 = ssub.s32 1, %s4
  %s7 = scalar_select 0, %s6, %s4
  $region1: #{tpu_custom_call.1} parent=0
    #allocation2 [shape = 'u8[8192]{0}', space=vmem, size = 0x2000, scoped, tag = 'input window, operand 0']
    #allocation3 [shape = 's32[2]{0}', space=sflag, size = 0x8, scoped, tag = 'scoped memory for tpu_custom_call.1']
    #allocation4 [shape = 's32[2]{0}', space=sflag, size = 0x8, scoped, tag = 'scoped memory for tpu_custom_call.1']
    #allocation5 [shape = 'u8[8192]{0}', space=vmem, size = 0x2000, scoped, tag = 'output window, operand 0']
    %8 = vsyncpa [#allocation3], 0
    %s9 = scalar_lea.sflag [#allocation3], 1
    %10 = vsyncpa %s9, 0
    %11 = vsyncpa [#allocation4], 0
    %s12 = scalar_lea.sflag [#allocation4], 1
    %13 = vsyncpa %s12, 0
    loop: start=0, step=1, limit=4
    $region2: #{tpu_custom_call.1} parent=1 // loop_pre_header
      _
    $region3: #{tpu_custom_call.1} parent=1 // loop_header
      %s15 = sphi 0, %s19
      %p16 = scmp.ge.s32.totalorder %s15, 4
      %s22 = sphi 0, %s34
      %s23 = sphi 0, %s30
      %s24 = sphi 0, %s22
      %s25 = sphi 0, %s23
      %s26 = sphi 0, %s24
      %s27 = sphi 0, %s25
      %s39 = sphi 0, %s41
      %s42 = sphi 0, %s39
      %s43 = sphi 0, %s42
      %s59 = sphi 0, %s43
      %s65 = sphi 0, %s67
      %s68 = sphi 0, %s65
      %s69 = sphi 0, %s68
      %s85 = sphi 0, %s69
      %s91 = sphi 0, %s93
      %s94 = sphi 0, %s91
      %s95 = sphi 0, %s94
      %s111 = sphi 0, %s95
      %s119 = sphi 0, %s121
      %s122 = sphi 0, %s119
      %s123 = sphi 0, %s122
      %s139 = sphi 0, %s123
    $region4: #{tpu_custom_call.1} parent=1 // loop_header_branch
      %18 = sbr.rel (%p16) target = $region8
    $region5: #{tpu_custom_call.1} parent=1 // loop_body
      %s20 = ssub.s32 %s15, 1
      %s21 = ssub.s32 %s15, 2
      %s28 = sadd.s32 1, %s23
      %p29 = scmp.ge.s32.totalorder %s28, 1
      %s30 = scalar_select %p29, 0, %s28
      %s31 = sadd.s32 1, %s22
      %s32 = scalar_select %p29, %s31, %s22
      %p33 = scmp.ge.s32.totalorder %s32, 2
      %s34 = scalar_select %p33, 0, %s32
      %s35 = ssub.s32 %s22, %s34
      %s36 = ssub.s32 %s23, %s30
      %s37 = sor.u32 %s35, %s36
      %p38 = scmp.eq.s32.totalorder %s37, 0
      %s40 = sadd.s32 %s39, 1
      %s41 = scalar_select %p38, %s39, %s40
      %p44 = pneg %p38
      %p45 = scmp.eq.s32.totalorder %s15, 1
      %p46 = por %p44, %p45
      %p47 = scmp.ne.s32.totalorder %s39, %s42
      %p48 = scmp.eq.s32.totalorder %s15, 0
      %p49 = por %p47, %p48
      %p50 = scmp.ne.s32.totalorder %s39, %s42
      %p51 = scmp.eq.s32.totalorder %s20, 1
      %p52 = por %p50, %p51
      %p53 = scmp.ne.s32.totalorder %s42, %s43
      %p54 = scmp.eq.s32.totalorder %s20, 0
      %p55 = por %p53, %p54
      %p56 = scmp.ne.s32.totalorder %s42, %s43
      %p57 = scmp.eq.s32.totalorder %s21, 1
      %p58 = por %p56, %p57
      %p60 = scmp.ne.s32.totalorder %s43, %s59
      %p61 = scmp.eq.s32.totalorder %s21, 0
      %p62 = por %p60, %p61
      %s63 = ssub.s32 %s23, %s30
      %p64 = scmp.eq.s32.totalorder %s63, 0
      %s66 = sadd.s32 %s65, 1
      %s67 = scalar_select %p64, %s65, %s66
      %p70 = pneg %p64
      %p71 = scmp.eq.s32.totalorder %s15, 1
      %p72 = por %p70, %p71
      %p73 = scmp.ne.s32.totalorder %s65, %s68
      %p74 = scmp.eq.s32.totalorder %s15, 0
      %p75 = por %p73, %p74
      %p76 = scmp.ne.s32.totalorder %s65, %s68
      %p77 = scmp.eq.s32.totalorder %s20, 1
      %p78 = por %p76, %p77
      %p79 = scmp.ne.s32.totalorder %s68, %s69
      %p80 = scmp.eq.s32.totalorder %s20, 0
      %p81 = por %p79, %p80
      %p82 = scmp.ne.s32.totalorder %s68, %s69
      %p83 = scmp.eq.s32.totalorder %s21, 1
      %p84 = por %p82, %p83
      %p86 = scmp.ne.s32.totalorder %s69, %s85
      %p87 = scmp.eq.s32.totalorder %s21, 0
      %p88 = por %p86, %p87
      %s89 = ssub.s32 %s23, %s30
      %p90 = scmp.eq.s32.totalorder %s89, 0
      %s92 = sadd.s32 %s91, 1
      %s93 = scalar_select %p90, %s91, %s92
      %p96 = pneg %p90
      %p97 = scmp.eq.s32.totalorder %s15, 1
      %p98 = por %p96, %p97
      %p99 = scmp.ne.s32.totalorder %s91, %s94
      %p100 = scmp.eq.s32.totalorder %s15, 0
      %p101 = por %p99, %p100
      %p102 = scmp.ne.s32.totalorder %s91, %s94
      %p103 = scmp.eq.s32.totalorder %s20, 1
      %p104 = por %p102, %p103
      %p105 = scmp.ne.s32.totalorder %s94, %s95
      %p106 = scmp.eq.s32.totalorder %s20, 0
      %p107 = por %p105, %p106
      %p108 = scmp.ne.s32.totalorder %s94, %s95
      %p109 = scmp.eq.s32.totalorder %s21, 1
      %p110 = por %p108, %p109
      %p112 = scmp.ne.s32.totalorder %s95, %s111
      %p113 = scmp.eq.s32.totalorder %s21, 0
      %p114 = por %p112, %p113
      %s115 = ssub.s32 %s22, %s34
      %s116 = ssub.s32 %s23, %s30
      %s117 = sor.u32 %s115, %s116
      %p118 = scmp.eq.s32.totalorder %s117, 0
      %s120 = sadd.s32 %s119, 1
      %s121 = scalar_select %p118, %s119, %s120
      %p124 = pneg %p118
      %p125 = scmp.eq.s32.totalorder %s15, 1
      %p126 = por %p124, %p125
      %p127 = scmp.ne.s32.totalorder %s119, %s122
      %p128 = scmp.eq.s32.totalorder %s15, 0
      %p129 = por %p127, %p128
      %p130 = scmp.ne.s32.totalorder %s119, %s122
      %p131 = scmp.eq.s32.totalorder %s20, 1
      %p132 = por %p130, %p131
      %p133 = scmp.ne.s32.totalorder %s122, %s123
      %p134 = scmp.eq.s32.totalorder %s20, 0
      %p135 = por %p133, %p134
      %p136 = scmp.ne.s32.totalorder %s122, %s123
      %p137 = scmp.eq.s32.totalorder %s21, 1
      %p138 = por %p136, %p137
      %p140 = scmp.ne.s32.totalorder %s123, %s139
      %p141 = scmp.eq.s32.totalorder %s21, 0
      %p142 = por %p140, %p141
      %p143 = scmp.le.s32.totalorder 1, %s15
      %p144 = scmp.lt.s32.totalorder %s15, 3
      %p145 = pnand %p143, %p144
      %p146 = pneg %p145
      // Predicated region
      $region9: #{tpu_custom_call.1} parent=5 // pred_check
        _
      $region10: #{tpu_custom_call.1} parent=5 // pred_check_branch
        %148 = sbr.rel (%p145) target = $region12
      $region11: #{tpu_custom_call.1} parent=5 // pred_region
        %s149 = ssub.s32 %s15, 1
        // Predicated region
        $region13: #{tpu_custom_call.1} parent=11 // pred_check
          %p150 = pneg %p81
        $region14: #{tpu_custom_call.1} parent=11 // pred_check_branch
          %152 = sbr.rel (%p150) target = $region16
        $region15: #{tpu_custom_call.1} parent=11 // pred_region
          %p153 = scmp.lt.s32.totalorder %s25, 0
          %s154 = scalar_select %p153, %s25, 0
          %s155 = smul.addr %s154, 4
          %s156 = scalar_lea.vmem %s1, %s155
        $region16: #{tpu_custom_call.1} parent=11 // pred_fallthru
          _
        // Predicated region
        $region17: #{tpu_custom_call.1} parent=11 // pred_check
          %p157 = pneg %p107
        $region18: #{tpu_custom_call.1} parent=11 // pred_check_branch
          %159 = sbr.rel (%p157) target = $region20
        $region19: #{tpu_custom_call.1} parent=11 // pred_region
          %p160 = scmp.lt.s32.totalorder %s25, 0
          %s161 = scalar_select %p160, %s25, 0
          %s162 = smul.addr %s161, 4
          %s163 = scalar_lea.vmem %s2, %s162
        $region20: #{tpu_custom_call.1} parent=11 // pred_fallthru
          _
      $region12: #{tpu_custom_call.1} parent=5 // pred_fallthru
        _
      %p164 = scmp.lt.s32.totalorder %s15, 2
      // Predicated region
      $region21: #{tpu_custom_call.1} parent=5 // pred_check
        %p165 = pneg %p164
      $region22: #{tpu_custom_call.1} parent=5 // pred_check_branch
        %167 = sbr.rel (%p165) target = $region24
      $region23: #{tpu_custom_call.1} parent=5 // pred_region
        // Predicated region
        $region25: #{tpu_custom_call.1} parent=23 // pred_check
          %p168 = pneg %p49
        $region26: #{tpu_custom_call.1} parent=23 // pred_check_branch
          %170 = sbr.rel (%p168) target = $region28
        $region27: #{tpu_custom_call.1} parent=23 // pred_region
          %s171 = sand.u32 %s39, 1
          %s172 = scalar_lea.sflag [#allocation3], %s171
          %s173 = sand.u32 %s39, 1
          %s174 = smul.addr %s173, 8
          %s175 = scalar_lea.vmem [#allocation2], %s174
          %s177 = ssub.s32 128, 128
          %178 = vsyncadd %s172, %s177
          %s179 = smul.addr %s23, 2
          %s180 = smul.addr %s22, 2
          %s181 = sadd.s32 %s179, %s180
          %s182 = smul.addr %s181, 64
          %s183 = scalar_lea.hbm %s0, %s182
          %s185 = sshll.u32 %s175, 4
          %s186 = int_to_ptr.vmem [resolvable:$true] %s185
          %188 = dma.hbm_to_vmem [thread:$0]  %s183, 128, %s186, %s172
        $region28: #{tpu_custom_call.1} parent=23 // pred_fallthru
          _
      $region24: #{tpu_custom_call.1} parent=5 // pred_fallthru
        _
      %p189 = scmp.le.s32.totalorder 1, %s15
      %p190 = scmp.lt.s32.totalorder %s15, 3
      %p191 = pnand %p189, %p190
      %p192 = pneg %p191
      // Predicated region
      $region29: #{tpu_custom_call.1} parent=5 // pred_check
        _
      $region30: #{tpu_custom_call.1} parent=5 // pred_check_branch
        %194 = sbr.rel (%p191) target = $region32
      $region31: #{tpu_custom_call.1} parent=5 // pred_region
        %s195 = ssub.s32 %s15, 1
        %s196 = sand.u32 %s42, 1
        %s197 = scalar_lea.sflag [#allocation3], %s196
        %s198 = sand.u32 %s42, 1
        %s199 = smul.addr %s198, 8
        %s200 = scalar_lea.vmem [#allocation2], %s199
        // Predicated region
        $region33: #{tpu_custom_call.1} parent=31 // pred_check
          %p201 = pneg %p55
        $region34: #{tpu_custom_call.1} parent=31 // pred_check_branch
          %203 = sbr.rel (%p201) target = $region36
        $region35: #{tpu_custom_call.1} parent=31 // pred_region
          %204 = dma.done %s197, 128
        $region36: #{tpu_custom_call.1} parent=31 // pred_fallthru
          _
        %s205 = sand.u32 %s42, 1
        %s206 = scalar_lea.sflag [#allocation3], %s205
        %s207 = sand.u32 %s42, 1
        %s208 = smul.addr %s207, 8
        %s209 = scalar_lea.vmem [#allocation2], %s208
        %p210 = pneg %p55
        %p211 = pneg %p52
        %p212 = scmp.lt.s32.totalorder %s25, 0
        %s213 = scalar_select %p212, %s25, 0
        %s214 = smul.addr %s213, 4
        %s215 = scalar_lea.vmem %s1, %s214
        %p216 = pneg %p81
        %p217 = pneg %p78
        %p218 = scmp.lt.s32.totalorder %s25, 0
        %s219 = scalar_select %p218, %s25, 0
        %s220 = smul.addr %s219, 4
        %s221 = scalar_lea.vmem %s2, %s220
        %p222 = pneg %p107
        %p223 = pneg %p104
        %p224 = pneg %p135
        %p225 = pneg %p132
        %s226 = sand.u32 %s122, 1
        %s227 = scalar_lea.sflag [#allocation4], %s226
        %s228 = sand.u32 %s122, 1
        %s229 = smul.addr %s228, 8
        %s230 = scalar_lea.vmem [#allocation5], %s229
        %p231 = scmp.lt.s32.totalorder %s25, 0
        %s232 = scalar_select %p231, %s25, 0
        %s233 = smul.addr %s232, 4
        %s234 = scalar_lea.vmem %s1, %s233
        %p235 = scmp.lt.s32.totalorder %s25, 0
        %s236 = scalar_select %p235, %s25, 0
        %s237 = smul.addr %s236, 4
        %s238 = scalar_lea.vmem %s2, %s237
        %v239 = vld [vmem:[%s200] sm:$0xff]
        %v240 = vld [vmem:[%s234] sm:$0xf]
        %v241 = vlaneseq
        %v242 = vand.u32 %v241, 127
        %v243 = vadd.s32 %v242, 128
        %vm244 = vcmp.lt.s32.totalorder %v242, 0
        %v245 = vsub.s32 0, %v242
        %v246 = vsel %vm244, %v245, %v242
        %v247 = vshrl.u32 %v246, 4
        %v248 = vand.u32 %v246, 15
        %v249 = vsub.s32 0, %v248
        %v250 = vsel %vm244, %v249, %v248
        %vm251 = vcmp.lt.s32.totalorder %v243, 0
        %v252 = vsub.s32 0, %v243
        %v253 = vsel %vm251, %v252, %v243
        %v254 = vshrl.u32 %v253, 4
        %v255 = vand.u32 %v253, 15
        %v256 = vsub.s32 0, %v255
        %v257 = vsel %vm251, %v256, %v255
        %vm258 = vcmp.ne.s32.totalorder %v250, 0
        %vm259 = vcmp.ne.s32.totalorder %v257, 0
        %vm260 = vcmp.lt.s32.totalorder %v250, 0
        %vm261 = vcmp.lt.s32.totalorder %v257, 0
        %vm262 = vmand %vm260, %vm258
        %vm263 = vmand %vm261, %vm259
        %v264 = vadd.s32 %v250, 16
        %v265 = vadd.s32 %v257, 16
        %v266 = vsel %vm262, %v264, %v250
        %v267 = vsel %vm263, %v265, %v257
        %vm268 = vcmp.ne.s32.totalorder %v266, 0
        %vm269 = vcmp.ne.s32.totalorder %v267, 0
        %v271 = vcombine.high %v239, %v239
        %272 = vrot.lane.b32.xlu0 %v239, 1
        %v273 = vpop.permute.xlu0 %272
        %274 = vrot.lane.b32.xlu0 %v271, 1
        %v275 = vpop.permute.xlu0 %274
        %vm276 = vcmask 7168
        %v277 = vsel %vm276, %v273, %v275
        %v280 = vsel %vm276, 0.0, %v273
        %v281 = vsel %vm268, %v280, 0.0
        %v282 = vsel %vm269, %v277, 0.0
        %vm283 = vcmp.ne.s32.totalorder %v266, 15
        %vm284 = vcmp.ne.s32.totalorder %v267, 15
        %285 = vrot.lane.b32.xlu0 %v239, 127
        %v286 = vpop.permute.xlu0 %285
        %287 = vrot.lane.b32.xlu0 %v271, 127
        %v288 = vpop.permute.xlu0 %287
        %vm289 = vcmask 1039360
        %v290 = vsel %vm289, %v286, %v288
        %v293 = vsel %vm289, %v288, 0.0
        %v294 = vsel %vm283, %v290, 0.0
        %v295 = vsel %vm284, %v293, 0.0
        %v296 = vld [vmem:[%s238] sm:$0xf]
        %298 = vset.pattern.permute.xlu0 3
        %299 = vperm.xlu0 %298, %v240
        %v300 = vpop.permute.xlu0 %299
        %v302 = vmul.f32 %v281, %v300
        %v303 = vmul.f32 %v282, %v300
        %304 = vset.pattern.permute.xlu0 4
        %305 = vperm.xlu0 %304, %v240
        %v306 = vpop.permute.xlu0 %305
        %v308 = vunpack.c.l.s4 839922192
        %v309 = vunpack.c.0.s8 %v308
        %v310 = vlaneseq
        %v311 = vshrl.u32 %v310, 7
        %v312 = vsub.s32 %v309, %v311
        %v313 = vrot.slane %v306, %v312
        %v315 = vmul.f32 %v239, %v313
        %v317 = vcombine.high %v315, %v315
        %v319 = vadd.f32 %v302, %v315
        %v320 = vadd.f32 %v303, %v317
        %321 = vset.pattern.permute.xlu0 5
        %322 = vperm.xlu0 %321, %v240
        %v323 = vpop.permute.xlu0 %322
        %v325 = vmul.f32 %v294, %v323
        %v326 = vmul.f32 %v295, %v323
        %v327 = vadd.f32 %v319, %v325
        %v328 = vadd.f32 %v320, %v326
        %330 = vset.pattern.permute.xlu0 0
        %331 = vperm.xlu0 %330, %v296
        %v332 = vpop.permute.xlu0 %331
        %v334 = vadd.f32 %v332, %v327
        %v335 = vadd.f32 %v332, %v328
        %336 = vset.pattern.permute.xlu0 0
        %337 = vperm.xlu0 %336, %v240
        %v338 = vpop.permute.xlu0 %337
        %v340 = vmul.f32 %v281, %v338
        %v341 = vmul.f32 %v282, %v338
        %342 = vset.pattern.permute.xlu0 1
        %343 = vperm.xlu0 %342, %v240
        %v344 = vpop.permute.xlu0 %343
        %v346 = vunpack.c.l.s4 839922192
        %v347 = vunpack.c.0.s8 %v346
        %v348 = vlaneseq
        %v349 = vshrl.u32 %v348, 7
        %v350 = vsub.s32 %v347, %v349
        %v351 = vrot.slane %v344, %v350
        %v353 = vmul.f32 %v239, %v351
        %v355 = vcombine.high %v353, %v353
        %v357 = vadd.f32 %v340, %v353
        %v358 = vadd.f32 %v341, %v355
        %359 = vset.pattern.permute.xlu0 2
        %360 = vperm.xlu0 %359, %v240
        %v361 = vpop.permute.xlu0 %360
        %v363 = vmul.f32 %v294, %v361
        %v364 = vmul.f32 %v295, %v361
        %v365 = vadd.f32 %v357, %v363
        %v366 = vadd.f32 %v358, %v364
        %369 = vrot.lane.b32.xlu0 %v365, 16
        %v370 = vpop.permute.xlu0 %369
        %371 = vrot.lane.b32.xlu0 %v366, 16
        %v372 = vpop.permute.xlu0 %371
        %vm373 = vcmask 130048
        %v374 = vsel %vm373, %v370, %v372
        %v377 = vsel %vm373, 0.0, %v370
        %v378 = vadd.f32 %v334, %v377
        %v379 = vadd.f32 %v335, %v374
        %380 = vset.pattern.permute.xlu0 6
        %381 = vperm.xlu0 %380, %v240
        %v382 = vpop.permute.xlu0 %381
        %v384 = vmul.f32 %v281, %v382
        %v385 = vmul.f32 %v282, %v382
        %386 = vset.pattern.permute.xlu0 7
        %387 = vperm.xlu0 %386, %v240
        %v388 = vpop.permute.xlu0 %387
        %v390 = vunpack.c.l.s4 839922192
        %v391 = vunpack.c.0.s8 %v390
        %v392 = vlaneseq
        %v393 = vshrl.u32 %v392, 7
        %v394 = vsub.s32 %v391, %v393
        %v395 = vrot.slane %v388, %v394
        %v397 = vmul.f32 %v239, %v395
        %v399 = vcombine.high %v397, %v397
        %v401 = vadd.f32 %v384, %v397
        %v402 = vadd.f32 %v385, %v399
        %403 = vset.pattern.permute.xlu0 8
        %404 = vperm.xlu0 %403, %v240
        %v405 = vpop.permute.xlu0 %404
        %v407 = vmul.f32 %v294, %v405
        %v408 = vmul.f32 %v295, %v405
        %v409 = vadd.f32 %v401, %v407
        %v410 = vadd.f32 %v402, %v408
        %413 = vrot.lane.b32.xlu0 %v409, 112
        %v414 = vpop.permute.xlu0 %413
        %415 = vrot.lane.b32.xlu0 %v410, 112
        %v416 = vpop.permute.xlu0 %415
        %vm417 = vcmask 916480
        %v418 = vsel %vm417, %v414, %v416
        %v421 = vsel %vm417, %v416, 0.0
        %v422 = vadd.f32 %v378, %v418
        %v423 = vadd.f32 %v379, %v421
        %v426 = vcombine.low %v422, %v423
        %428 = vst [vmem:[%s230] sm:$0xff] %v426
        %s429 = sand.u32 %s122, 1
        %s430 = scalar_lea.sflag [#allocation4], %s429
        %s431 = sand.u32 %s122, 1
        %s432 = smul.addr %s431, 8
        %s433 = scalar_lea.vmem [#allocation5], %s432
        // Predicated region
        $region37: #{tpu_custom_call.1} parent=31 // pred_check
          %p434 = pneg %p132
        $region38: #{tpu_custom_call.1} parent=31 // pred_check_branch
          %436 = sbr.rel (%p434) target = $region40
        $region39: #{tpu_custom_call.1} parent=31 // pred_region
          %s438 = ssub.s32 128, 128
          %439 = vsyncadd %s430, %s438
          %s440 = smul.addr %s25, 2
          %s441 = smul.addr %s24, 2
          %s442 = sadd.s32 %s440, %s441
          %s443 = smul.addr %s442, 64
          %s444 = scalar_lea.hbm %s3, %s443
          %s446 = sshll.u32 %s433, 4
          %s447 = int_to_ptr.vmem [resolvable:$true] %s446
          %449 = dma.vmem_to_hbm [thread:$0]  %s447, 128, %s444, %s430
        $region40: #{tpu_custom_call.1} parent=31 // pred_fallthru
          _
      $region32: #{tpu_custom_call.1} parent=5 // pred_fallthru
        _
      %p450 = scmp.le.s32.totalorder 2, %s15
      // Predicated region
      $region41: #{tpu_custom_call.1} parent=5 // pred_check
        %p451 = pneg %p450
      $region42: #{tpu_custom_call.1} parent=5 // pred_check_branch
        %453 = sbr.rel (%p451) target = $region44
      $region43: #{tpu_custom_call.1} parent=5 // pred_region
        %s454 = ssub.s32 %s15, 2
        // Predicated region
        $region45: #{tpu_custom_call.1} parent=43 // pred_check
          %p455 = pneg %p138
        $region46: #{tpu_custom_call.1} parent=43 // pred_check_branch
          %457 = sbr.rel (%p455) target = $region48
        $region47: #{tpu_custom_call.1} parent=43 // pred_region
          %s458 = sand.u32 %s123, 1
          %s459 = scalar_lea.sflag [#allocation4], %s458
          %s460 = sand.u32 %s123, 1
          %s461 = smul.addr %s460, 8
          %s462 = scalar_lea.vmem [#allocation5], %s461
          %463 = dma.done %s459, 128
        $region48: #{tpu_custom_call.1} parent=43 // pred_fallthru
          _
      $region44: #{tpu_custom_call.1} parent=5 // pred_fallthru
        _
    $region6: #{tpu_custom_call.1} parent=1 // loop_footer
      %s19 = sadd.s32 1, %s15
    $region7: #{tpu_custom_call.1} parent=1 // loop_footer_branch
      %14 = sbr.rel target = $region3
    $region8: #{tpu_custom_call.1} parent=1 // loop_exit
      _
    %464 = vsyncpa [#allocation3], 1
    %s465 = scalar_lea.sflag [#allocation3], 1
    %466 = vsyncpa %s465, 1
    %467 = vsyncpa [#allocation4], 1
    %s468 = scalar_lea.sflag [#allocation4], 1
    %469 = vsyncpa %s468, 1

</llo_original>
